<compile_context>
chip_gen: v7x
topology: tpu7x:2x2x1
jax: 0.10.0
libtpu: 0.0.40
codegen_flags: <defaults>
</compile_context>

<pallas_src>
import functools

import jax
import jax.numpy as jnp
from jax.experimental import pallas as pl
from jax.experimental.pallas import tpu as pltpu


# ----------------------------------------------------------------------------
# Activation (ACT2FN equivalent for the common Qwen2-VL vision configs).
# ----------------------------------------------------------------------------
def _apply_act(h, hidden_act):
    if hidden_act == "quick_gelu":          # Qwen2-VL vision default
        return h * jax.nn.sigmoid(1.702 * h)
    if hidden_act == "gelu":
        return jax.nn.gelu(h, approximate=False)
    if hidden_act in ("gelu_new", "gelu_pytorch_tanh"):
        return jax.nn.gelu(h, approximate=True)
    if hidden_act == "silu":
        return h * jax.nn.sigmoid(h)
    if hidden_act == "relu":
        return jnp.maximum(h, 0.0)
    raise ValueError(f"unsupported hidden_act: {hidden_act}")


# ----------------------------------------------------------------------------
# Kernel: one (seq_tile, hidden_tile) step of the fused MLP.
#   fc1 GEMM  : (bm, D) x (D, bh)  -> h  (f32)
#   activation: elementwise on h
#   fc2 GEMM  : (bm, bh) x (bh, D) -> accumulate into resident (bm, D) f32 acc
#   last hidden tile: add fc2 bias, cast, store output tile.
# ----------------------------------------------------------------------------
def vision_mlp_kernel(x_ref, w1_ref, b1_ref, w2_ref, b2_ref, o_ref, acc_ref,
                      *, hidden_act):
    j = pl.program_id(1)

    @pl.when(j == 0)
    def _init():
        acc_ref[...] = jnp.zeros_like(acc_ref)

    # fc1 tile + bias (f32 accumulation on the MXU).
    h = jnp.dot(x_ref[...], w1_ref[...], preferred_element_type=jnp.float32)
    h = h + b1_ref[...]                      # (bm, bh) f32

    # activation in f32.
    h = _apply_act(h, hidden_act)

    # fc2 partial GEMM over this hidden tile, accumulate in f32.
    acc_ref[...] += jnp.dot(h.astype(w2_ref.dtype), w2_ref[...],
                            preferred_element_type=jnp.float32)

    @pl.when(j == pl.num_programs(1) - 1)
    def _finalize():
        o_ref[...] = (acc_ref[...] + b2_ref[...]).astype(o_ref.dtype)


def _largest_divisor(n, candidates):
    for c in candidates:
        if n % c == 0:
            return c
    return n


# ----------------------------------------------------------------------------
# Wrapper: host-side weight layout + pallas_call.
#   fc1_w : [hidden, dim]  (torch nn.Linear layout)   fc1_b : [hidden]
#   fc2_w : [dim, hidden]                              fc2_b : [dim]
# ----------------------------------------------------------------------------
def vision_mlp(x, fc1_w, fc1_b, fc2_w, fc2_b, *, hidden_act="quick_gelu",
               block_m=None, block_h=None, compute_dtype=None):
    S, D = x.shape
    Hd = fc1_w.shape[0]
    assert fc1_w.shape == (Hd, D)
    assert fc2_w.shape == (D, Hd)

    # Pre-transpose on host: no transposes inside the kernel.
    w1 = fc1_w.T            # [D, Hd]
    w2 = fc2_w.T            # [Hd, D]
    b1 = fc1_b.reshape(1, Hd).astype(jnp.float32)
    b2 = fc2_b.reshape(1, D).astype(jnp.float32)

    if compute_dtype is not None:           # e.g. jnp.bfloat16 on v6e/v7x
        x_c = x.astype(compute_dtype)
        w1 = w1.astype(compute_dtype)
        w2 = w2.astype(compute_dtype)
    else:
        x_c = x

    # Tile sizes: lane-dense hidden tiles (multiples of 128), seq tiles large
    # enough to amortize per-step overhead but VMEM-safe on v7x (64 MiB).
    if block_m is None:
        block_m = _largest_divisor(S, (512, 256, 128, 64, 32, 16, 8))
    if block_h is None:
        block_h = _largest_divisor(Hd, (512, 384, 256, 128))
    assert S % block_m == 0 and Hd % block_h == 0

    grid = (S // block_m, Hd // block_h)

    kernel = functools.partial(vision_mlp_kernel, hidden_act=hidden_act)

    out = pl.pallas_call(
        kernel,
        out_shape=jax.ShapeDtypeStruct((S, D), x.dtype),
        grid=grid,
        in_specs=[
            # x tile stays resident across the hidden (reduction) axis.
            pl.BlockSpec((block_m, D), lambda i, j: (i, 0)),   # x
            pl.BlockSpec((D, block_h), lambda i, j: (0, j)),   # W1 (pre-T)
            pl.BlockSpec((1, block_h), lambda i, j: (0, j)),   # b1
            pl.BlockSpec((block_h, D), lambda i, j: (j, 0)),   # W2 (pre-T)
            pl.BlockSpec((1, D), lambda i, j: (0, 0)),         # b2
        ],
        out_specs=pl.BlockSpec((block_m, D), lambda i, j: (i, 0)),
        scratch_shapes=[pltpu.VMEM((block_m, D), jnp.float32)],  # f32 accumulator
        compiler_params=pltpu.CompilerParams(
            dimension_semantics=("parallel", "arbitrary"),
        ),
    )(x_c, w1, b1, w2, b2)
    return out


# ----------------------------------------------------------------------------
# Plain-JAX reference mirroring the PyTorch forward (for validation only).
# ----------------------------------------------------------------------------
def reference(x, fc1_w, fc1_b, fc2_w, fc2_b, hidden_act="quick_gelu"):
    h = x @ fc1_w.T + fc1_b
    h = _apply_act(h, hidden_act)
    return h @ fc2_w.T + fc2_b


if __name__ == "__main__":
    key = jax.random.PRNGKey(0)
    # Small but multi-tile shapes: seq=256, dim=32, hidden=256
    # -> grid (2 seq tiles, 2 hidden tiles), exercising both the parallel seq
    #    axis and the hidden-axis accumulation.
    S, D, Hd = 256, 32, 256
    ks = jax.random.split(key, 5)
    x = jax.random.normal(ks[0], (S, D), jnp.float32)
    fc1_w = jax.random.normal(ks[1], (Hd, D), jnp.float32) * 0.1
    fc1_b = jax.random.normal(ks[2], (Hd,), jnp.float32) * 0.1
    fc2_w = jax.random.normal(ks[3], (D, Hd), jnp.float32) * 0.1
    fc2_b = jax.random.normal(ks[4], (D,), jnp.float32) * 0.1

    out = vision_mlp(x, fc1_w, fc1_b, fc2_w, fc2_b,
                     hidden_act="quick_gelu", block_m=128, block_h=128)
    out = jax.block_until_ready(out)

    ref = reference(x, fc1_w, fc1_b, fc2_w, fc2_b, hidden_act="quick_gelu")
    err = float(jnp.max(jnp.abs(out - ref)))
    assert jnp.allclose(out, ref, atol=1e-4, rtol=1e-4), f"max abs err {err}"
    print("KERNEL_OK")
</pallas_src>

<mosaic_0001>
module attributes {stable_mosaic.version = 11 : i64} {
  func.func @vision_mlp_kernel(%arg0: i32, %arg1: i32, %arg2: memref<128x32xf32, #tpu.memory_space<vmem>>, %arg3: memref<32x128xf32, #tpu.memory_space<vmem>>, %arg4: memref<1x128xf32, #tpu.memory_space<vmem>>, %arg5: memref<128x32xf32, #tpu.memory_space<vmem>>, %arg6: memref<1x32xf32, #tpu.memory_space<vmem>>, %arg7: memref<128x32xf32, #tpu.memory_space<vmem>>, %arg8: memref<128x32xf32, #tpu.memory_space<vmem>>) attributes {dimension_semantics = [#tpu.dimension_semantics<parallel>, #tpu.dimension_semantics<arbitrary>], iteration_bounds = array<i64: 2, 2>, scalar_prefetch = 0 : i64, scratch_operands = 1 : i64, tpu.core_type = #tpu.core_type<tc>, window_params = [{transform_indices = @transform_0, window_bounds = array<i64: 128, 32>}, {transform_indices = @transform_1, window_bounds = array<i64: 32, 128>}, {transform_indices = @transform_2, window_bounds = array<i64: 1, 128>}, {transform_indices = @transform_3, window_bounds = array<i64: 128, 32>}, {pipeline_mode = #tpu.pipeline_mode<synchronous>, transform_indices = @transform_4, window_bounds = array<i64: 1, 32>}, {transform_indices = @transform_5, window_bounds = array<i64: 128, 32>}]} {
    %c0_i32 = arith.constant 0 : i32
    %0 = arith.cmpi eq, %arg1, %c0_i32 : i32
    %1 = arith.extui %0 : i1 to i32
    %c0_i32_0 = arith.constant 0 : i32
    %2 = arith.cmpi ne, %1, %c0_i32_0 : i32
    scf.if %2 {
      %cst_16 = arith.constant 0.000000e+00 : f32
      %25 = vector.broadcast %cst_16 : f32 to vector<128x32xf32>
      %c0_17 = arith.constant 0 : index
      %c0_18 = arith.constant 0 : index
      %26 = vector.load %arg8[%c0_17, %c0_18] : memref<128x32xf32, #tpu.memory_space<vmem>>, vector<128x32xf32>
      tpu.vector_store %arg8[%c0_17, %c0_18], %25 {strides = array<i32>} : memref<128x32xf32, #tpu.memory_space<vmem>>, vector<128x32xf32>,
    } else {
    }
    %c0 = arith.constant 0 : index
    %c0_1 = arith.constant 0 : index
    %3 = vector.load %arg2[%c0, %c0_1] : memref<128x32xf32, #tpu.memory_space<vmem>>, vector<128x32xf32>
    %c0_2 = arith.constant 0 : index
    %c0_3 = arith.constant 0 : index
    %4 = vector.load %arg3[%c0_2, %c0_3] : memref<32x128xf32, #tpu.memory_space<vmem>>, vector<32x128xf32>
    %cst = arith.constant dense<0.000000e+00> : vector<128x128xf32>
    %5 = tpu.matmul %3, %4, %cst {dimension_numbers = #tpu.dot_dimension_numbers<[1], [0], [0], [1], [0, 0, 1, 1], [], []>} : vector<128x32xf32>, vector<32x128xf32>, vector<128x128xf32> -> vector<128x128xf32>
    %c0_4 = arith.constant 0 : index
    %c0_5 = arith.constant 0 : index
    %6 = vector.load %arg4[%c0_4, %c0_5] : memref<1x128xf32, #tpu.memory_space<vmem>>, vector<1x128xf32>
    %7 = vector.broadcast %6 : vector<1x128xf32> to vector<128x128xf32>
    %8 = arith.addf %5, %7 : vector<128x128xf32>
    %cst_6 = arith.constant 1.702000e+00 : f32
    %9 = vector.broadcast %cst_6 : f32 to vector<128x128xf32>
    %10 = arith.mulf %9, %8 : vector<128x128xf32>
    %11 = arith.negf %10 : vector<128x128xf32>
    %12 = math.exp %11 : vector<128x128xf32>
    %cst_7 = arith.constant 1.000000e+00 : f32
    %13 = vector.broadcast %cst_7 : f32 to vector<128x128xf32>
    %14 = arith.addf %13, %12 : vector<128x128xf32>
    %15 = arith.divf %13, %14 : vector<128x128xf32>
    %16 = arith.mulf %8, %15 : vector<128x128xf32>
    %c0_8 = arith.constant 0 : index
    %c0_9 = arith.constant 0 : index
    %17 = vector.load %arg8[%c0_8, %c0_9] : memref<128x32xf32, #tpu.memory_space<vmem>>, vector<128x32xf32>
    %c0_10 = arith.constant 0 : index
    %c0_11 = arith.constant 0 : index
    %18 = vector.load %arg5[%c0_10, %c0_11] : memref<128x32xf32, #tpu.memory_space<vmem>>, vector<128x32xf32>
    %cst_12 = arith.constant dense<0.000000e+00> : vector<128x32xf32>
    %19 = tpu.matmul %16, %18, %cst_12 {dimension_numbers = #tpu.dot_dimension_numbers<[1], [0], [0], [1], [0, 0, 1, 1], [], []>} : vector<128x128xf32>, vector<128x32xf32>, vector<128x32xf32> -> vector<128x32xf32>
    %20 = arith.addf %17, %19 : vector<128x32xf32>
    %c0_13 = arith.constant 0 : index
    %c0_14 = arith.constant 0 : index
    %21 = vector.load %arg8[%c0_13, %c0_14] : memref<128x32xf32, #tpu.memory_space<vmem>>, vector<128x32xf32>
    tpu.vector_store %arg8[%c0_13, %c0_14], %20 {strides = array<i32>} : memref<128x32xf32, #tpu.memory_space<vmem>>, vector<128x32xf32>,
    %c1_i32 = arith.constant 1 : i32
    %22 = arith.cmpi eq, %arg1, %c1_i32 : i32
    %23 = arith.extui %22 : i1 to i32
    %c0_i32_15 = arith.constant 0 : i32
    %24 = arith.cmpi ne, %23, %c0_i32_15 : i32
    scf.if %24 {
      %c0_16 = arith.constant 0 : index
      %c0_17 = arith.constant 0 : index
      %25 = vector.load %arg8[%c0_16, %c0_17] : memref<128x32xf32, #tpu.memory_space<vmem>>, vector<128x32xf32>
      %c0_18 = arith.constant 0 : index
      %c0_19 = arith.constant 0 : index
      %26 = vector.load %arg6[%c0_18, %c0_19] : memref<1x32xf32, #tpu.memory_space<vmem>>, vector<1x32xf32>
      %27 = vector.broadcast %26 : vector<1x32xf32> to vector<128x32xf32>
      %28 = arith.addf %25, %27 : vector<128x32xf32>
      %c0_20 = arith.constant 0 : index
      %c0_21 = arith.constant 0 : index
      %29 = vector.load %arg7[%c0_20, %c0_21] : memref<128x32xf32, #tpu.memory_space<vmem>>, vector<128x32xf32>
      tpu.vector_store %arg7[%c0_20, %c0_21], %28 {strides = array<i32>} : memref<128x32xf32, #tpu.memory_space<vmem>>, vector<128x32xf32>,
    } else {
    }
    return
  }
  func.func @transform_0(%arg0: i32, %arg1: i32) -> (i32, i32) {
    %c0_i32 = arith.constant 0 : i32
    %c0_i32_0 = arith.constant 0 : i32
    return %arg0, %c0_i32 : i32, i32
  }
  func.func @transform_1(%arg0: i32, %arg1: i32) -> (i32, i32) {
    %c0_i32 = arith.constant 0 : i32
    %c0_i32_0 = arith.constant 0 : i32
    return %c0_i32, %arg1 : i32, i32
  }
  func.func @transform_2(%arg0: i32, %arg1: i32) -> (i32, i32) {
    %c0_i32 = arith.constant 0 : i32
    %c0_i32_0 = arith.constant 0 : i32
    return %c0_i32, %arg1 : i32, i32
  }
  func.func @transform_3(%arg0: i32, %arg1: i32) -> (i32, i32) {
    %c0_i32 = arith.constant 0 : i32
    %c0_i32_0 = arith.constant 0 : i32
    return %arg1, %c0_i32 : i32, i32
  }
  func.func @transform_4(%arg0: i32, %arg1: i32) -> (i32, i32) {
    %c0_i32 = arith.constant 0 : i32
    %c0_i32_0 = arith.constant 0 : i32
    %c0_i32_1 = arith.constant 0 : i32
    return %c0_i32, %c0_i32_0 : i32, i32
  }
  func.func @transform_5(%arg0: i32, %arg1: i32) -> (i32, i32) {
    %c0_i32 = arith.constant 0 : i32
    %c0_i32_0 = arith.constant 0 : i32
    return %arg0, %c0_i32 : i32, i32
  }
}

</mosaic_0001>

<llo_original>
// kernel: tpu_custom_call.1
$region0: #{tpu_custom_call.1}
  #allocation0 [shape = 'u32[]', space=smem, size = 0x4, offset = 0x4, fixed_abs, tag = 'smem constant byte address 0x4 - core index']
  #allocation1 [shape = 'u32[144,128]{1,0:T(1,128)}', space=vmem, size = 0x12000, scoped, tag = 'internal scratch']
  #allocation2 [shape = 'f32[128,32]{1,0:T(8,128)}', space=vmem, size = 0x10000, scoped, tag = 'scratch operand']
  %s0 = inlined_call_operand.vmem [shape: f32[256,32], index: 0, kind: input, shape index: {}]
  %s1 = inlined_call_operand.vmem [shape: f32[32,256], index: 1, kind: input, shape index: {}]
  %s2 = inlined_call_operand.vmem [shape: f32[1,256], index: 2, kind: input, shape index: {}]
  %s3 = inlined_call_operand.vmem [shape: f32[256,32], index: 3, kind: input, shape index: {}]
  %s4 = inlined_call_operand.vmem [shape: f32[1,32], index: 4, kind: input, shape index: {}]
  %s5 = inlined_call_operand.vmem [shape: f32[256,32], index: 5, kind: output, shape index: {}]
  %s6 = sld [smem:[#allocation0]]
  $region99: #{tpu_custom_call.1} parent=0
    _
  %s8 = ssub.s32 1, %s6
  %s9 = scalar_select 0, %s8, %s6
  $region1: #{tpu_custom_call.1} parent=0
    #allocation3 [shape = 'u8[32768]{0}', space=vmem, size = 0x8000, scoped, tag = 'input window, operand 1']
    loop: start=0, step=1, limit=6
    $region2: #{tpu_custom_call.1} parent=1 // loop_pre_header
      _
    $region3: #{tpu_custom_call.1} parent=1 // loop_header
      %s11 = sphi 0, %s15
      %p12 = scmp.ge.s32.totalorder %s11, 6
      %s18 = sphi 0, %s30
      %s19 = sphi 0, %s26
      %s20 = sphi 0, %s18
      %s21 = sphi 0, %s19
      %s22 = sphi 0, %s20
      %s23 = sphi 0, %s21
      %s33 = sphi 0, %s35
      %s36 = sphi 0, %s33
      %s37 = sphi 0, %s36
      %s53 = sphi 0, %s37
      %s59 = sphi 0, %s61
      %s62 = sphi 0, %s59
      %s63 = sphi 0, %s62
      %s79 = sphi 0, %s63
      %s85 = sphi 0, %s87
      %s88 = sphi 0, %s85
      %s89 = sphi 0, %s88
      %s105 = sphi 0, %s89
      %s111 = sphi 0, %s113
      %s114 = sphi 0, %s111
      %s115 = sphi 0, %s114
      %s131 = sphi 0, %s115
      %s135 = sphi 0, %s135
      %s137 = sphi 0, %s135
      %s138 = sphi 0, %s137
      %s152 = sphi 0, %s138
      %s158 = sphi 0, %s160
      %s161 = sphi 0, %s158
      %s162 = sphi 0, %s161
      %s178 = sphi 0, %s162
    $region4: #{tpu_custom_call.1} parent=1 // loop_header_branch
      %14 = sbr.rel (%p12) target = $region8
    $region5: #{tpu_custom_call.1} parent=1 // loop_body
      %s16 = ssub.s32 %s11, 1
      %s17 = ssub.s32 %s11, 2
      %s24 = sadd.s32 1, %s19
      %p25 = scmp.ge.s32.totalorder %s24, 2
      %s26 = scalar_select %p25, 0, %s24
      %s27 = sadd.s32 1, %s18
      %s28 = scalar_select %p25, %s27, %s18
      %p29 = scmp.ge.s32.totalorder %s28, 2
      %s30 = scalar_select %p29, 0, %s28
      %s31 = ssub.s32 %s18, %s30
      %p32 = scmp.eq.s32.totalorder %s31, 0
      %s34 = sadd.s32 %s33, 1
      %s35 = scalar_select %p32, %s33, %s34
      %p38 = pneg %p32
      %p39 = scmp.eq.s32.totalorder %s11, 3
      %p40 = por %p38, %p39
      %p41 = scmp.ne.s32.totalorder %s33, %s36
      %p42 = scmp.eq.s32.totalorder %s11, 0
      %p43 = por %p41, %p42
      %p44 = scmp.ne.s32.totalorder %s33, %s36
      %p45 = scmp.eq.s32.totalorder %s16, 3
      %p46 = por %p44, %p45
      %p47 = scmp.ne.s32.totalorder %s36, %s37
      %p48 = scmp.eq.s32.totalorder %s16, 0
      %p49 = por %p47, %p48
      %p50 = scmp.ne.s32.totalorder %s36, %s37
      %p51 = scmp.eq.s32.totalorder %s17, 3
      %p52 = por %p50, %p51
      %p54 = scmp.ne.s32.totalorder %s37, %s53
      %p55 = scmp.eq.s32.totalorder %s17, 0
      %p56 = por %p54, %p55
      %s57 = ssub.s32 %s19, %s26
      %p58 = scmp.eq.s32.totalorder %s57, 0
      %s60 = sadd.s32 %s59, 1
      %s61 = scalar_select %p58, %s59, %s60
      %p64 = pneg %p58
      %p65 = scmp.eq.s32.totalorder %s11, 3
      %p66 = por %p64, %p65
      %p67 = scmp.ne.s32.totalorder %s59, %s62
      %p68 = scmp.eq.s32.totalorder %s11, 0
      %p69 = por %p67, %p68
      %p70 = scmp.ne.s32.totalorder %s59, %s62
      %p71 = scmp.eq.s32.totalorder %s16, 3
      %p72 = por %p70, %p71
      %p73 = scmp.ne.s32.totalorder %s62, %s63
      %p74 = scmp.eq.s32.totalorder %s16, 0
      %p75 = por %p73, %p74
      %p76 = scmp.ne.s32.totalorder %s62, %s63
      %p77 = scmp.eq.s32.totalorder %s17, 3
      %p78 = por %p76, %p77
      %p80 = scmp.ne.s32.totalorder %s63, %s79
      %p81 = scmp.eq.s32.totalorder %s17, 0
      %p82 = por %p80, %p81
      %s83 = ssub.s32 %s19, %s26
      %p84 = scmp.eq.s32.totalorder %s83, 0
      %s86 = sadd.s32 %s85, 1
      %s87 = scalar_select %p84, %s85, %s86
      %p90 = pneg %p84
      %p91 = scmp.eq.s32.totalorder %s11, 3
      %p92 = por %p90, %p91
      %p93 = scmp.ne.s32.totalorder %s85, %s88
      %p94 = scmp.eq.s32.totalorder %s11, 0
      %p95 = por %p93, %p94
      %p96 = scmp.ne.s32.totalorder %s85, %s88
      %p97 = scmp.eq.s32.totalorder %s16, 3
      %p98 = por %p96, %p97
      %p99 = scmp.ne.s32.totalorder %s88, %s89
      %p100 = scmp.eq.s32.totalorder %s16, 0
      %p101 = por %p99, %p100
      %p102 = scmp.ne.s32.totalorder %s88, %s89
      %p103 = scmp.eq.s32.totalorder %s17, 3
      %p104 = por %p102, %p103
      %p106 = scmp.ne.s32.totalorder %s89, %s105
      %p107 = scmp.eq.s32.totalorder %s17, 0
      %p108 = por %p106, %p107
      %s109 = ssub.s32 %s19, %s26
      %p110 = scmp.eq.s32.totalorder %s109, 0
      %s112 = sadd.s32 %s111, 1
      %s113 = scalar_select %p110, %s111, %s112
      %p116 = pneg %p110
      %p117 = scmp.eq.s32.totalorder %s11, 3
      %p118 = por %p116, %p117
      %p119 = scmp.ne.s32.totalorder %s111, %s114
      %p120 = scmp.eq.s32.totalorder %s11, 0
      %p121 = por %p119, %p120
      %p122 = scmp.ne.s32.totalorder %s111, %s114
      %p123 = scmp.eq.s32.totalorder %s16, 3
      %p124 = por %p122, %p123
      %p125 = scmp.ne.s32.totalorder %s114, %s115
      %p126 = scmp.eq.s32.totalorder %s16, 0
      %p127 = por %p125, %p126
      %p128 = scmp.ne.s32.totalorder %s114, %s115
      %p129 = scmp.eq.s32.totalorder %s17, 3
      %p130 = por %p128, %p129
      %p132 = scmp.ne.s32.totalorder %s115, %s131
      %p133 = scmp.eq.s32.totalorder %s17, 0
      %p134 = por %p132, %p133
      %s136 = sadd.s32 %s135, 1
      %p139 = scmp.eq.s32.totalorder %s11, 3
      %p140 = scmp.ne.s32.totalorder %s135, %s137
      %p141 = scmp.eq.s32.totalorder %s11, 0
      %p142 = por %p140, %p141
      %p143 = scmp.ne.s32.totalorder %s135, %s137
      %p144 = scmp.eq.s32.totalorder %s16, 3
      %p145 = por %p143, %p144
      %p146 = scmp.ne.s32.totalorder %s137, %s138
      %p147 = scmp.eq.s32.totalorder %s16, 0
      %p148 = por %p146, %p147
      %p149 = scmp.ne.s32.totalorder %s137, %s138
      %p150 = scmp.eq.s32.totalorder %s17, 3
      %p151 = por %p149, %p150
      %p153 = scmp.ne.s32.totalorder %s138, %s152
      %p154 = scmp.eq.s32.totalorder %s17, 0
      %p155 = por %p153, %p154
      %s156 = ssub.s32 %s18, %s30
      %p157 = scmp.eq.s32.totalorder %s156, 0
      %s159 = sadd.s32 %s158, 1
      %s160 = scalar_select %p157, %s158, %s159
      %p163 = pneg %p157
      %p164 = scmp.eq.s32.totalorder %s11, 3
      %p165 = por %p163, %p164
      %p166 = scmp.ne.s32.totalorder %s158, %s161
      %p167 = scmp.eq.s32.totalorder %s11, 0
      %p168 = por %p166, %p167
      %p169 = scmp.ne.s32.totalorder %s158, %s161
      %p170 = scmp.eq.s32.totalorder %s16, 3
      %p171 = por %p169, %p170
      %p172 = scmp.ne.s32.totalorder %s161, %s162
      %p173 = scmp.eq.s32.totalorder %s16, 0
      %p174 = por %p172, %p173
      %p175 = scmp.ne.s32.totalorder %s161, %s162
      %p176 = scmp.eq.s32.totalorder %s17, 3
      %p177 = por %p175, %p176
      %p179 = scmp.ne.s32.totalorder %s162, %s178
      %p180 = scmp.eq.s32.totalorder %s17, 0
      %p181 = por %p179, %p180
      %p182 = scmp.le.s32.totalorder 1, %s11
      %p183 = scmp.lt.s32.totalorder %s11, 5
      %p184 = pnand %p182, %p183
      %p185 = pneg %p184
      // Predicated region
      $region9: #{tpu_custom_call.1} parent=5 // pred_check
        _
      $region10: #{tpu_custom_call.1} parent=5 // pred_check_branch
        %187 = sbr.rel (%p184) target = $region12
      $region11: #{tpu_custom_call.1} parent=5 // pred_region
        %s188 = ssub.s32 %s11, 1
        // Predicated region
        $region13: #{tpu_custom_call.1} parent=11 // pred_check
          %p189 = pneg %p148
        $region14: #{tpu_custom_call.1} parent=11 // pred_check_branch
          %191 = sbr.rel (%p189) target = $region16
        $region15: #{tpu_custom_call.1} parent=11 // pred_region
          _
        $region16: #{tpu_custom_call.1} parent=11 // pred_fallthru
          _
      $region12: #{tpu_custom_call.1} parent=5 // pred_fallthru
        _
      %p192 = scmp.lt.s32.totalorder %s11, 4
      // Predicated region
      $region17: #{tpu_custom_call.1} parent=5 // pred_check
        %p193 = pneg %p192
      $region18: #{tpu_custom_call.1} parent=5 // pred_check_branch
        %195 = sbr.rel (%p193) target = $region20
      $region19: #{tpu_custom_call.1} parent=5 // pred_region
        // Predicated region
        $region21: #{tpu_custom_call.1} parent=19 // pred_check
          %p196 = pneg %p43
        $region22: #{tpu_custom_call.1} parent=19 // pred_check_branch
          %198 = sbr.rel (%p196) target = $region24
        $region23: #{tpu_custom_call.1} parent=19 // pred_region
          %s199 = smul.u32 16, %s18
          %p200 = scmp.lt.s32.totalorder %s199, 31
          %s201 = scalar_select %p200, %s199, 31
          %s202 = smul.addr %s201, 8
          %s203 = scalar_lea.vmem %s0, %s202
          %s204 = smul.u32 16, %s18
        $region24: #{tpu_custom_call.1} parent=19 // pred_fallthru
          _
        // Predicated region
        $region25: #{tpu_custom_call.1} parent=19 // pred_check
          %p205 = pneg %p69
        $region26: #{tpu_custom_call.1} parent=19 // pred_check_branch
          %207 = sbr.rel (%p205) target = $region28
        $region27: #{tpu_custom_call.1} parent=19 // pred_region
          %s208 = sand.u32 %s59, 1
          %s209 = sand.u32 %s59, 1
          %s210 = smul.addr %s209, 32
          %s211 = scalar_lea.vmem [#allocation3], %s210
          %s212 = smul.addr %s19, 8
          %s213 = scalar_lea.vmem %s1, %s212
          // Predicated region
          $region29: #{tpu_custom_call.1} parent=27 // pred_check
            _
          $region30: #{tpu_custom_call.1} parent=27 // pred_check_branch
            %215 = sbr.rel (0) target = $region32
          $region31: #{tpu_custom_call.1} parent=27 // pred_region
            // Predicated region
            $region33: #{tpu_custom_call.1} parent=31 // pred_check
              _
            $region34: #{tpu_custom_call.1} parent=31 // pred_check_branch
              %217 = sbr.rel (0) target = $region36
            $region35: #{tpu_custom_call.1} parent=31 // pred_region
              // Predicated region
              $region48: #{tpu_custom_call.1} parent=35 // pred_check
                _
              $region49: #{tpu_custom_call.1} parent=35 // pred_check_branch
                %238 = sbr.rel (0) target = $region51
              $region50: #{tpu_custom_call.1} parent=35 // pred_region
                loop: start=0, step=1, limit=1
                $region52: #{tpu_custom_call.1} parent=50 // loop_pre_header
                  _
                $region53: #{tpu_custom_call.1} parent=50 // loop_header
                  %s240 = sphi 0, %s244
                  %p241 = scmp.ge.s32.totalorder %s240, 1
                  %s245 = sphi %s213, %s213
                  %s246 = sphi %s211, %s211
                $region54: #{tpu_custom_call.1} parent=50 // loop_header_branch
                  %243 = sbr.rel (%p241) target = $region58
                $region55: #{tpu_custom_call.1} parent=50 // loop_body
                  %v247 = vld [vmem:[%s245] sm:$0xff]
                  %248 = vst [vmem:[%s246] sm:$0xff] %v247
                  %v249 = vld [vmem:[%s245 + $0x10] sm:$0xff]
                  %250 = vst [vmem:[%s246 + $0x8] sm:$0xff] %v249
                  %v251 = vld [vmem:[%s245 + $0x20] sm:$0xff]
                  %252 = vst [vmem:[%s246 + $0x10] sm:$0xff] %v251
                  %v253 = vld [vmem:[%s245 + $0x30] sm:$0xff]
                  %254 = vst [vmem:[%s246 + $0x18] sm:$0xff] %v253
                $region56: #{tpu_custom_call.1} parent=50 // loop_footer
                  %s244 = sadd.s32 1, %s240
                $region57: #{tpu_custom_call.1} parent=50 // loop_footer_branch
                  %239 = sbr.rel target = $region53
                $region58: #{tpu_custom_call.1} parent=50 // loop_exit
                  _
              $region51: #{tpu_custom_call.1} parent=35 // pred_fallthru
                _
              // Predicated region
              $region59: #{tpu_custom_call.1} parent=35 // pred_check
                _
              $region60: #{tpu_custom_call.1} parent=35 // pred_check_branch
                %256 = sbr.rel target = $region62
              $region61: #{tpu_custom_call.1} parent=35 // pred_region
                _
              $region62: #{tpu_custom_call.1} parent=35 // pred_fallthru
                _
            $region36: #{tpu_custom_call.1} parent=31 // pred_fallthru
              _
            // Predicated region
            $region37: #{tpu_custom_call.1} parent=31 // pred_check
              _
            $region38: #{tpu_custom_call.1} parent=31 // pred_check_branch
              %219 = sbr.rel target = $region40
            $region39: #{tpu_custom_call.1} parent=31 // pred_region
              loop: start=0, step=1, limit=1
              $region41: #{tpu_custom_call.1} parent=39 // loop_pre_header
                _
              $region42: #{tpu_custom_call.1} parent=39 // loop_header
                %s222 = sphi 0, %s226
                %p223 = scmp.ge.s32.totalorder %s222, 1
                %s227 = sphi %s213, %s213
                %s228 = sphi %s211, %s211
              $region43: #{tpu_custom_call.1} parent=39 // loop_header_branch
                %225 = sbr.rel (%p223) target = $region47
              $region44: #{tpu_custom_call.1} parent=39 // loop_body
                %v229 = vld [vmem:[%s227] sm:$0xff]
                %230 = vst [vmem:[%s228] sm:$0xff] %v229
                %v231 = vld [vmem:[%s227 + $0x10] sm:$0xff]
                %232 = vst [vmem:[%s228 + $0x8] sm:$0xff] %v231
                %v233 = vld [vmem:[%s227 + $0x20] sm:$0xff]
                %234 = vst [vmem:[%s228 + $0x10] sm:$0xff] %v233
                %v235 = vld [vmem:[%s227 + $0x30] sm:$0xff]
                %236 = vst [vmem:[%s228 + $0x18] sm:$0xff] %v235
              $region45: #{tpu_custom_call.1} parent=39 // loop_footer
                %s226 = sadd.s32 1, %s222
              $region46: #{tpu_custom_call.1} parent=39 // loop_footer_branch
                %221 = sbr.rel target = $region42
              $region47: #{tpu_custom_call.1} parent=39 // loop_exit
                _
            $region40: #{tpu_custom_call.1} parent=31 // pred_fallthru
              _
          $region32: #{tpu_custom_call.1} parent=27 // pred_fallthru
            _
          %257 = vnop
        $region28: #{tpu_custom_call.1} parent=19 // pred_fallthru
          _
        // Predicated region
        $region63: #{tpu_custom_call.1} parent=19 // pred_check
          %p258 = pneg %p95
        $region64: #{tpu_custom_call.1} parent=19 // pred_check_branch
          %260 = sbr.rel (%p258) target = $region66
        $region65: #{tpu_custom_call.1} parent=19 // pred_region
          %p261 = scmp.lt.s32.totalorder %s19, 1
          %s262 = scalar_select %p261, %s19, 1
          %s263 = scalar_lea.vmem %s2, %s262
        $region66: #{tpu_custom_call.1} parent=19 // pred_fallthru
          _
        // Predicated region
        $region67: #{tpu_custom_call.1} parent=19 // pred_check
          %p264 = pneg %p121
        $region68: #{tpu_custom_call.1} parent=19 // pred_check_branch
          %266 = sbr.rel (%p264) target = $region70
        $region69: #{tpu_custom_call.1} parent=19 // pred_region
          %s267 = smul.u32 16, %s19
          %p268 = scmp.lt.s32.totalorder %s267, 31
          %s269 = scalar_select %p268, %s267, 31
          %s270 = smul.addr %s269, 8
          %s271 = scalar_lea.vmem %s3, %s270
          %s272 = smul.u32 16, %s19
        $region70: #{tpu_custom_call.1} parent=19 // pred_fallthru
          _
      $region20: #{tpu_custom_call.1} parent=5 // pred_fallthru
        _
      %p273 = scmp.le.s32.totalorder 1, %s11
      %p274 = scmp.lt.s32.totalorder %s11, 5
      %p275 = pnand %p273, %p274
      %p276 = pneg %p275
      // Predicated region
      $region71: #{tpu_custom_call.1} parent=5 // pred_check
        _
      $region72: #{tpu_custom_call.1} parent=5 // pred_check_branch
        %278 = sbr.rel (%p275) target = $region74
      $region73: #{tpu_custom_call.1} parent=5 // pred_region
        %s279 = ssub.s32 %s11, 1
        %s280 = sand.u32 %s62, 1
        %s281 = sand.u32 %s62, 1
        %s282 = smul.addr %s281, 32
        %s283 = scalar_lea.vmem [#allocation3], %s282
        // Predicated region
        $region75: #{tpu_custom_call.1} parent=73 // pred_check
          %p284 = pneg %p75
        $region76: #{tpu_custom_call.1} parent=73 // pred_check_branch
          %286 = sbr.rel (%p284) target = $region78
        $region77: #{tpu_custom_call.1} parent=73 // pred_region
          _
        $region78: #{tpu_custom_call.1} parent=73 // pred_fallthru
          _
        %s287 = smul.u32 16, %s20
        %p288 = scmp.lt.s32.totalorder %s287, 31
        %s289 = scalar_select %p288, %s287, 31
        %s290 = smul.addr %s289, 8
        %s291 = scalar_lea.vmem %s0, %s290
        %p292 = pneg %p49
        %p293 = pneg %p46
        %s294 = sand.u32 %s62, 1
        %s295 = sand.u32 %s62, 1
        %s296 = smul.addr %s295, 32
        %s297 = scalar_lea.vmem [#allocation3], %s296
        %p298 = pneg %p75
        %p299 = pneg %p72
        %p300 = scmp.lt.s32.totalorder %s21, 1
        %s301 = scalar_select %p300, %s21, 1
        %s302 = scalar_lea.vmem %s2, %s301
        %p303 = pneg %p101
        %p304 = pneg %p98
        %s305 = smul.u32 16, %s21
        %p306 = scmp.lt.s32.totalorder %s305, 31
        %s307 = scalar_select %p306, %s305, 31
        %s308 = smul.addr %s307, 8
        %s309 = scalar_lea.vmem %s3, %s308
        %p310 = pneg %p127
        %p311 = pneg %p124
        %p312 = pneg %p148
        %p313 = pneg %p145
        %p314 = pneg %p174
        %p315 = pneg %p171
        %s316 = smul.u32 16, %s20
        %p317 = scmp.lt.s32.totalorder %s316, 31
        %s318 = scalar_select %p317, %s316, 31
        %s319 = smul.addr %s318, 8
        %s320 = scalar_lea.vmem %s5, %s319
        %s321 = smul.u32 16, %s20
        %p322 = scmp.lt.s32.totalorder %s321, 31
        %s323 = scalar_select %p322, %s321, 31
        %s324 = smul.addr %s323, 8
        %s325 = scalar_lea.vmem %s0, %s324
        %s326 = smul.u32 16, %s20
        %p327 = scmp.lt.s32.totalorder %s21, 1
        %s328 = scalar_select %p327, %s21, 1
        %s329 = scalar_lea.vmem %s2, %s328
        %s330 = smul.u32 16, %s21
        %p331 = scmp.lt.s32.totalorder %s330, 31
        %s332 = scalar_select %p331, %s330, 31
        %s333 = smul.addr %s332, 8
        %s334 = scalar_lea.vmem %s3, %s333
        %s335 = smul.u32 16, %s21
        %s336 = smul.u32 16, %s20
        %p337 = scmp.lt.s32.totalorder %s336, 31
        %s338 = scalar_select %p337, %s336, 31
        %s339 = smul.addr %s338, 8
        %s340 = scalar_lea.vmem %s5, %s339
        %s341 = smul.u32 16, %s20
        %p342 = scmp.eq.s32.totalorder %s21, 0
        // Predicated region
        $region79: #{tpu_custom_call.1} parent=73 // pred_check
          %p343 = pneg %p342
        $region80: #{tpu_custom_call.1} parent=73 // pred_check_branch
          %345 = sbr.rel (%p343) target = $region82
        $region81: #{tpu_custom_call.1} parent=73 // pred_region
          %vm346 = vcmask 261120
          %347 = vst.msk [vmem:[#allocation2] sm:$0xff] %vm346, 0.0
          %348 = vst.msk [vmem:[#allocation2 + $0x8] sm:$0xff] %vm346, 0.0
          %349 = vst.msk [vmem:[#allocation2 + $0x10] sm:$0xff] %vm346, 0.0
          %350 = vst.msk [vmem:[#allocation2 + $0x18] sm:$0xff] %vm346, 0.0
          %351 = vst.msk [vmem:[#allocation2 + $0x20] sm:$0xff] %vm346, 0.0
          %352 = vst.msk [vmem:[#allocation2 + $0x28] sm:$0xff] %vm346, 0.0
          %353 = vst.msk [vmem:[#allocation2 + $0x30] sm:$0xff] %vm346, 0.0
          %354 = vst.msk [vmem:[#allocation2 + $0x38] sm:$0xff] %vm346, 0.0
          %355 = vst.msk [vmem:[#allocation2 + $0x40] sm:$0xff] %vm346, 0.0
          %356 = vst.msk [vmem:[#allocation2 + $0x48] sm:$0xff] %vm346, 0.0
          %357 = vst.msk [vmem:[#allocation2 + $0x50] sm:$0xff] %vm346, 0.0
          %358 = vst.msk [vmem:[#allocation2 + $0x58] sm:$0xff] %vm346, 0.0
          %359 = vst.msk [vmem:[#allocation2 + $0x60] sm:$0xff] %vm346, 0.0
          %360 = vst.msk [vmem:[#allocation2 + $0x68] sm:$0xff] %vm346, 0.0
          %361 = vst.msk [vmem:[#allocation2 + $0x70] sm:$0xff] %vm346, 0.0
          %362 = vst.msk [vmem:[#allocation2 + $0x78] sm:$0xff] %vm346, 0.0
        $region82: #{tpu_custom_call.1} parent=73 // pred_fallthru
          _
        %v363 = vld [vmem:[%s325] sm:$0xff]
        %v364 = vld [vmem:[%s325 + $0x8] sm:$0xff]
        %v365 = vld [vmem:[%s325 + $0x10] sm:$0xff]
        %v366 = vld [vmem:[%s325 + $0x18] sm:$0xff]
        %v367 = vld [vmem:[%s325 + $0x20] sm:$0xff]
        %v368 = vld [vmem:[%s325 + $0x28] sm:$0xff]
        %v369 = vld [vmem:[%s325 + $0x30] sm:$0xff]
        %v370 = vld [vmem:[%s325 + $0x38] sm:$0xff]
        %v371 = vld [vmem:[%s325 + $0x40] sm:$0xff]
        %v372 = vld [vmem:[%s325 + $0x48] sm:$0xff]
        %v373 = vld [vmem:[%s325 + $0x50] sm:$0xff]
        %v374 = vld [vmem:[%s325 + $0x58] sm:$0xff]
        %v375 = vld [vmem:[%s325 + $0x60] sm:$0xff]
        %v376 = vld [vmem:[%s325 + $0x68] sm:$0xff]
        %v377 = vld [vmem:[%s325 + $0x70] sm:$0xff]
        %v378 = vld [vmem:[%s325 + $0x78] sm:$0xff]
        %v379 = vld [vmem:[%s283] sm:$0xff]
        %v380 = vld [vmem:[%s283 + $0x8] sm:$0xff]
        %v381 = vld [vmem:[%s283 + $0x10] sm:$0xff]
        %v382 = vld [vmem:[%s283 + $0x18] sm:$0xff]
        %v383 = vld [vmem:[%s329] sm:$0x1]
        %v385 = vlaneseq
        %v386 = vshrl.u32 %v385, 7
        %v387 = vsub.s32 0, %v386
        %v388 = vrot.slane %v383, %v387
        %vm390 = vcmask 261120
        %v392 = vsel %vm390, %v363, 0
        %v395 = vsel %vm390, %v364, 0
        %v398 = vsel %vm390, %v365, 0
        %v401 = vsel %vm390, %v366, 0
        %v404 = vsel %vm390, %v367, 0
        %v407 = vsel %vm390, %v368, 0
        %v410 = vsel %vm390, %v369, 0
        %v413 = vsel %vm390, %v370, 0
        %v416 = vsel %vm390, %v371, 0
        %v419 = vsel %vm390, %v372, 0
        %v422 = vsel %vm390, %v373, 0
        %v425 = vsel %vm390, %v374, 0
        %v428 = vsel %vm390, %v375, 0
        %v431 = vsel %vm390, %v376, 0
        %v434 = vsel %vm390, %v377, 0
        %v437 = vsel %vm390, %v378, 0
        %439 = vmatprep.subr.mxu0 0.0
        %440 = vmatpush1.msra.mxu0 %v379
        %441 = vmatprep.subr.mxu0 0.0
        %442 = vmatpush1.msra.mxu0 %v380
        %443 = vmatprep.subr.mxu0 0.0
        %444 = vmatpush1.msra.mxu0 %v381
        %445 = vmatprep.subr.mxu0 0.0
        %446 = vmatpush1.msra.mxu0 %v382
        %447 = vmatprep.subr.mxu0 0.0
        %448 = vmatpush1.msra.mxu0 0.0
        %449 = vmatprep.subr.mxu0 0.0
        %450 = vmatpush1.msra.mxu0 0.0
        %451 = vmatprep.subr.mxu0 0.0
        %452 = vmatpush1.msra.mxu0 0.0
        %453 = vmatprep.subr.mxu0 0.0
        %454 = vmatpush1.msra.mxu0 0.0
        %455 = vmatprep.subr.mxu0 0.0
        %456 = vmatpush1.msra.mxu0 0.0
        %457 = vmatprep.subr.mxu0 0.0
        %458 = vmatpush1.msra.mxu0 0.0
        %459 = vmatprep.subr.mxu0 0.0
        %460 = vmatpush1.msra.mxu0 0.0
        %461 = vmatprep.subr.mxu0 0.0
        %462 = vmatpush1.msra.mxu0 0.0
        %463 = vmatprep.subr.mxu0 0.0
        %464 = vmatpush1.msra.mxu0 0.0
        %465 = vmatprep.subr.mxu0 0.0
        %466 = vmatpush1.msra.mxu0 0.0
        %467 = vmatprep.subr.mxu0 0.0
        %468 = vmatpush1.msra.mxu0 0.0
        %469 = vmatprep.subr.mxu0 0.0
        %470 = vmatpush1.msra.mxu0 0.0
        %471 = vmatprep.subr.mxu0 0.0
        %472 = vmatpush1.msra.mxu0 0.0
        %473 = vmatprep.subr.mxu0 0.0
        %474 = vmatpush1.msra.mxu0 0.0
        %475 = vmatprep.subr.mxu0 0.0
        %476 = vmatpush1.msra.mxu0 0.0
        %477 = vmatprep.subr.mxu0 0.0
        %478 = vmatpush1.msra.mxu0 0.0
        %479 = vmatprep.subr.mxu0 0.0
        %480 = vmatpush1.msra.mxu0 0.0
        %481 = vmatprep.subr.mxu0 0.0
        %482 = vmatpush1.msra.mxu0 0.0
        %483 = vmatprep.subr.mxu0 0.0
        %484 = vmatpush1.msra.mxu0 0.0
        %485 = vmatprep.subr.mxu0 0.0
        %486 = vmatpush1.msra.mxu0 0.0
        %487 = vmatprep.subr.mxu0 0.0
        %488 = vmatpush1.msra.mxu0 0.0
        %489 = vmatprep.subr.mxu0 0.0
        %490 = vmatpush1.msra.mxu0 0.0
        %491 = vmatprep.subr.mxu0 0.0
        %492 = vmatpush1.msra.mxu0 0.0
        %493 = vmatprep.subr.mxu0 0.0
        %494 = vmatpush1.msra.mxu0 0.0
        %495 = vmatprep.subr.mxu0 0.0
        %496 = vmatpush1.msra.mxu0 0.0
        %497 = vmatprep.subr.mxu0 0.0
        %498 = vmatpush1.msra.mxu0 0.0
        %499 = vmatprep.subr.mxu0 0.0
        %500 = vmatpush1.msra.mxu0 0.0
        %501 = vmatprep.subr.mxu0 0.0
        %502 = vmatpush1.msra.mxu0 0.0
        %503 = vmatprep.mubr.f32.mxu0 0.0
        %504 = vmatmul.mubr.f32.gmra.mrb[0].mxu0 %v392
        %v505 = vpop.f32.mrb[0].mxu0
        %v506 = vadd.f32 %v388, %v505
        %v507 = vpop.f32.mrb[0].mxu0
        %508 = vmatprep.mubr.f32.mxu0 0.0
        %509 = vmatmul.mubr.f32.gmra.mrb[0].mxu0 %v395
        %v510 = vpop.f32.mrb[0].mxu0
        %v511 = vadd.f32 %v388, %v510
        %v512 = vpop.f32.mrb[0].mxu0
        %513 = vmatprep.mubr.f32.mxu0 0.0
        %514 = vmatmul.mubr.f32.gmra.mrb[0].mxu0 %v398
        %v515 = vpop.f32.mrb[0].mxu0
        %v516 = vadd.f32 %v388, %v515
        %v517 = vpop.f32.mrb[0].mxu0
        %518 = vmatprep.mubr.f32.mxu0 0.0
        %519 = vmatmul.mubr.f32.gmra.mrb[0].mxu0 %v401
        %v520 = vpop.f32.mrb[0].mxu0
        %v521 = vadd.f32 %v388, %v520
        %v522 = vpop.f32.mrb[0].mxu0
        %523 = vmatprep.mubr.f32.mxu0 0.0
        %524 = vmatmul.mubr.f32.gmra.mrb[0].mxu0 %v404
        %v525 = vpop.f32.mrb[0].mxu0
        %v526 = vadd.f32 %v388, %v525
        %v527 = vpop.f32.mrb[0].mxu0
        %528 = vmatprep.mubr.f32.mxu0 0.0
        %529 = vmatmul.mubr.f32.gmra.mrb[0].mxu0 %v407
        %v530 = vpop.f32.mrb[0].mxu0
        %v531 = vadd.f32 %v388, %v530
        %v532 = vpop.f32.mrb[0].mxu0
        %533 = vmatprep.mubr.f32.mxu0 0.0
        %534 = vmatmul.mubr.f32.gmra.mrb[0].mxu0 %v410
        %v535 = vpop.f32.mrb[0].mxu0
        %v536 = vadd.f32 %v388, %v535
        %v537 = vpop.f32.mrb[0].mxu0
        %538 = vmatprep.mubr.f32.mxu0 0.0
        %539 = vmatmul.mubr.f32.gmra.mrb[0].mxu0 %v413
        %v540 = vpop.f32.mrb[0].mxu0
        %v541 = vadd.f32 %v388, %v540
        %v542 = vpop.f32.mrb[0].mxu0
        %543 = vmatprep.mubr.f32.mxu0 0.0
        %544 = vmatmul.mubr.f32.gmra.mrb[0].mxu0 %v416
        %v545 = vpop.f32.mrb[0].mxu0
        %v546 = vadd.f32 %v388, %v545
        %v547 = vpop.f32.mrb[0].mxu0
        %548 = vmatprep.mubr.f32.mxu0 0.0
        %549 = vmatmul.mubr.f32.gmra.mrb[0].mxu0 %v419
        %v550 = vpop.f32.mrb[0].mxu0
        %v551 = vadd.f32 %v388, %v550
        %v552 = vpop.f32.mrb[0].mxu0
        %553 = vmatprep.mubr.f32.mxu0 0.0
        %554 = vmatmul.mubr.f32.gmra.mrb[0].mxu0 %v422
        %v555 = vpop.f32.mrb[0].mxu0
        %v556 = vadd.f32 %v388, %v555
        %v557 = vpop.f32.mrb[0].mxu0
        %558 = vmatprep.mubr.f32.mxu0 0.0
        %559 = vmatmul.mubr.f32.gmra.mrb[0].mxu0 %v425
        %v560 = vpop.f32.mrb[0].mxu0
        %v561 = vadd.f32 %v388, %v560
        %v562 = vpop.f32.mrb[0].mxu0
        %563 = vmatprep.mubr.f32.mxu0 0.0
        %564 = vmatmul.mubr.f32.gmra.mrb[0].mxu0 %v428
        %v565 = vpop.f32.mrb[0].mxu0
        %v566 = vadd.f32 %v388, %v565
        %v567 = vpop.f32.mrb[0].mxu0
        %568 = vmatprep.mubr.f32.mxu0 0.0
        %569 = vmatmul.mubr.f32.gmra.mrb[0].mxu0 %v431
        %v570 = vpop.f32.mrb[0].mxu0
        %v571 = vadd.f32 %v388, %v570
        %v572 = vpop.f32.mrb[0].mxu0
        %573 = vmatprep.mubr.f32.mxu0 0.0
        %574 = vmatmul.mubr.f32.gmra.mrb[0].mxu0 %v434
        %v575 = vpop.f32.mrb[0].mxu0
        %v576 = vadd.f32 %v388, %v575
        %v577 = vpop.f32.mrb[0].mxu0
        %578 = vmatprep.mubr.f32.mxu0 0.0
        %579 = vmatmul.mubr.f32.gmra.mrb[0].mxu0 %v437
        %v580 = vpop.f32.mrb[0].mxu0
        %v581 = vadd.f32 %v388, %v580
        %v582 = vpop.f32.mrb[0].mxu0
        %583 = vdwg.mxu0
        %v584 = vmul.f32 %v506, 1.702
        %v585 = vmul.f32 %v511, 1.702
        %v586 = vmul.f32 %v516, 1.702
        %v587 = vmul.f32 %v521, 1.702
        %v588 = vmul.f32 %v526, 1.702
        %v589 = vmul.f32 %v531, 1.702
        %v590 = vmul.f32 %v536, 1.702
        %v591 = vmul.f32 %v541, 1.702
        %v592 = vmul.f32 %v546, 1.702
        %v593 = vmul.f32 %v551, 1.702
        %v594 = vmul.f32 %v556, 1.702
        %v595 = vmul.f32 %v561, 1.702
        %v596 = vmul.f32 %v566, 1.702
        %v597 = vmul.f32 %v571, 1.702
        %v598 = vmul.f32 %v576, 1.702
        %v599 = vmul.f32 %v581, 1.702
        %v600 = vxor.u32 %v584, 2147483648
        %v601 = vxor.u32 %v585, 2147483648
        %v602 = vxor.u32 %v586, 2147483648
        %v603 = vxor.u32 %v587, 2147483648
        %v604 = vxor.u32 %v588, 2147483648
        %v605 = vxor.u32 %v589, 2147483648
        %v606 = vxor.u32 %v590, 2147483648
        %v607 = vxor.u32 %v591, 2147483648
        %v608 = vxor.u32 %v592, 2147483648
        %v609 = vxor.u32 %v593, 2147483648
        %v610 = vxor.u32 %v594, 2147483648
        %v611 = vxor.u32 %v595, 2147483648
        %v612 = vxor.u32 %v596, 2147483648
        %v613 = vxor.u32 %v597, 2147483648
        %v614 = vxor.u32 %v598, 2147483648
        %v615 = vxor.u32 %v599, 2147483648
        %v616 = vmul.f32 %v600, 1.442695
        %v617 = vpow.pop %v616
        %v618 = vmul.f32 %v601, 1.442695
        %v619 = vpow.pop %v618
        %v620 = vmul.f32 %v602, 1.442695
        %v621 = vpow.pop %v620
        %v622 = vmul.f32 %v603, 1.442695
        %v623 = vpow.pop %v622
        %v624 = vmul.f32 %v604, 1.442695
        %v625 = vpow.pop %v624
        %v626 = vmul.f32 %v605, 1.442695
        %v627 = vpow.pop %v626
        %v628 = vmul.f32 %v606, 1.442695
        %v629 = vpow.pop %v628
        %v630 = vmul.f32 %v607, 1.442695
        %v631 = vpow.pop %v630
        %v632 = vmul.f32 %v608, 1.442695
        %v633 = vpow.pop %v632
        %v634 = vmul.f32 %v609, 1.442695
        %v635 = vpow.pop %v634
        %v636 = vmul.f32 %v610, 1.442695
        %v637 = vpow.pop %v636
        %v638 = vmul.f32 %v611, 1.442695
        %v639 = vpow.pop %v638
        %v640 = vmul.f32 %v612, 1.442695
        %v641 = vpow.pop %v640
        %v642 = vmul.f32 %v613, 1.442695
        %v643 = vpow.pop %v642
        %v644 = vmul.f32 %v614, 1.442695
        %v645 = vpow.pop %v644
        %v646 = vmul.f32 %v615, 1.442695
        %v647 = vpow.pop %v646
        %v648 = vadd.f32 %v617, 1.0
        %v649 = vadd.f32 %v619, 1.0
        %v650 = vadd.f32 %v621, 1.0
        %v651 = vadd.f32 %v623, 1.0
        %v652 = vadd.f32 %v625, 1.0
        %v653 = vadd.f32 %v627, 1.0
        %v654 = vadd.f32 %v629, 1.0
        %v655 = vadd.f32 %v631, 1.0
        %v656 = vadd.f32 %v633, 1.0
        %v657 = vadd.f32 %v635, 1.0
        %v658 = vadd.f32 %v637, 1.0
        %v659 = vadd.f32 %v639, 1.0
        %v660 = vadd.f32 %v641, 1.0
        %v661 = vadd.f32 %v643, 1.0
        %v662 = vadd.f32 %v645, 1.0
        %v663 = vadd.f32 %v647, 1.0
        %v664 = vrcp.pop %v648
        %v665 = vmul.f32 1.0, %v664
        %v666 = vrcp.pop %v649
        %v667 = vmul.f32 1.0, %v666
        %v668 = vrcp.pop %v650
        %v669 = vmul.f32 1.0, %v668
        %v670 = vrcp.pop %v651
        %v671 = vmul.f32 1.0, %v670
        %v672 = vrcp.pop %v652
        %v673 = vmul.f32 1.0, %v672
        %v674 = vrcp.pop %v653
        %v675 = vmul.f32 1.0, %v674
        %v676 = vrcp.pop %v654
        %v677 = vmul.f32 1.0, %v676
        %v678 = vrcp.pop %v655
        %v679 = vmul.f32 1.0, %v678
        %v680 = vrcp.pop %v656
        %v681 = vmul.f32 1.0, %v680
        %v682 = vrcp.pop %v657
        %v683 = vmul.f32 1.0, %v682
        %v684 = vrcp.pop %v658
        %v685 = vmul.f32 1.0, %v684
        %v686 = vrcp.pop %v659
        %v687 = vmul.f32 1.0, %v686
        %v688 = vrcp.pop %v660
        %v689 = vmul.f32 1.0, %v688
        %v690 = vrcp.pop %v661
        %v691 = vmul.f32 1.0, %v690
        %v692 = vrcp.pop %v662
        %v693 = vmul.f32 1.0, %v692
        %v694 = vrcp.pop %v663
        %v695 = vmul.f32 1.0, %v694
        %v696 = vmul.f32 %v506, %v665
        %v697 = vmul.f32 %v511, %v667
        %v698 = vmul.f32 %v516, %v669
        %v699 = vmul.f32 %v521, %v671
        %v700 = vmul.f32 %v526, %v673
        %v701 = vmul.f32 %v531, %v675
        %v702 = vmul.f32 %v536, %v677
        %v703 = vmul.f32 %v541, %v679
        %v704 = vmul.f32 %v546, %v681
        %v705 = vmul.f32 %v551, %v683
        %v706 = vmul.f32 %v556, %v685
        %v707 = vmul.f32 %v561, %v687
        %v708 = vmul.f32 %v566, %v689
        %v709 = vmul.f32 %v571, %v691
        %v710 = vmul.f32 %v576, %v693
        %v711 = vmul.f32 %v581, %v695
        %v712 = vld [vmem:[#allocation2] sm:$0xff]
        %v713 = vld [vmem:[#allocation2 + $0x8] sm:$0xff]
        %v714 = vld [vmem:[#allocation2 + $0x10] sm:$0xff]
        %v715 = vld [vmem:[#allocation2 + $0x18] sm:$0xff]
        %v716 = vld [vmem:[#allocation2 + $0x20] sm:$0xff]
        %v717 = vld [vmem:[#allocation2 + $0x28] sm:$0xff]
        %v718 = vld [vmem:[#allocation2 + $0x30] sm:$0xff]
        %v719 = vld [vmem:[#allocation2 + $0x38] sm:$0xff]
        %v720 = vld [vmem:[#allocation2 + $0x40] sm:$0xff]
        %v721 = vld [vmem:[#allocation2 + $0x48] sm:$0xff]
        %v722 = vld [vmem:[#allocation2 + $0x50] sm:$0xff]
        %v723 = vld [vmem:[#allocation2 + $0x58] sm:$0xff]
        %v724 = vld [vmem:[#allocation2 + $0x60] sm:$0xff]
        %v725 = vld [vmem:[#allocation2 + $0x68] sm:$0xff]
        %v726 = vld [vmem:[#allocation2 + $0x70] sm:$0xff]
        %v727 = vld [vmem:[#allocation2 + $0x78] sm:$0xff]
        %v728 = vld [vmem:[%s334] sm:$0xff]
        %v729 = vld [vmem:[%s334 + $0x8] sm:$0xff]
        %v730 = vld [vmem:[%s334 + $0x10] sm:$0xff]
        %v731 = vld [vmem:[%s334 + $0x18] sm:$0xff]
        %v732 = vld [vmem:[%s334 + $0x20] sm:$0xff]
        %v733 = vld [vmem:[%s334 + $0x28] sm:$0xff]
        %v734 = vld [vmem:[%s334 + $0x30] sm:$0xff]
        %v735 = vld [vmem:[%s334 + $0x38] sm:$0xff]
        %v736 = vld [vmem:[%s334 + $0x40] sm:$0xff]
        %v737 = vld [vmem:[%s334 + $0x48] sm:$0xff]
        %v738 = vld [vmem:[%s334 + $0x50] sm:$0xff]
        %v739 = vld [vmem:[%s334 + $0x58] sm:$0xff]
        %v740 = vld [vmem:[%s334 + $0x60] sm:$0xff]
        %v741 = vld [vmem:[%s334 + $0x68] sm:$0xff]
        %v742 = vld [vmem:[%s334 + $0x70] sm:$0xff]
        %v743 = vld [vmem:[%s334 + $0x78] sm:$0xff]
        %744 = vmatprep.subr.mxu0 0.0
        %745 = vmatpush1.msra.mxu0 %v728
        %746 = vmatprep.subr.mxu0 0.0
        %747 = vmatpush1.msra.mxu0 %v729
        %748 = vmatprep.subr.mxu0 0.0
        %749 = vmatpush1.msra.mxu0 %v730
        %750 = vmatprep.subr.mxu0 0.0
        %751 = vmatpush1.msra.mxu0 %v731
        %752 = vmatprep.subr.mxu0 0.0
        %753 = vmatpush1.msra.mxu0 %v732
        %754 = vmatprep.subr.mxu0 0.0
        %755 = vmatpush1.msra.mxu0 %v733
        %756 = vmatprep.subr.mxu0 0.0
        %757 = vmatpush1.msra.mxu0 %v734
        %758 = vmatprep.subr.mxu0 0.0
        %759 = vmatpush1.msra.mxu0 %v735
        %760 = vmatprep.subr.mxu0 0.0
        %761 = vmatpush1.msra.mxu0 %v736
        %762 = vmatprep.subr.mxu0 0.0
        %763 = vmatpush1.msra.mxu0 %v737
        %764 = vmatprep.subr.mxu0 0.0
        %765 = vmatpush1.msra.mxu0 %v738
        %766 = vmatprep.subr.mxu0 0.0
        %767 = vmatpush1.msra.mxu0 %v739
        %768 = vmatprep.subr.mxu0 0.0
        %769 = vmatpush1.msra.mxu0 %v740
        %770 = vmatprep.subr.mxu0 0.0
        %771 = vmatpush1.msra.mxu0 %v741
        %772 = vmatprep.subr.mxu0 0.0
        %773 = vmatpush1.msra.mxu0 %v742
        %774 = vmatprep.subr.mxu0 0.0
        %775 = vmatpush1.msra.mxu0 %v743
        %776 = vmatprep.subr.mxu0 0.0
        %777 = vmatpush1.msra.mxu0 0.0
        %778 = vmatprep.subr.mxu0 0.0
        %779 = vmatpush1.msra.mxu0 0.0
        %780 = vmatprep.subr.mxu0 0.0
        %781 = vmatpush1.msra.mxu0 0.0
        %782 = vmatprep.subr.mxu0 0.0
        %783 = vmatpush1.msra.mxu0 0.0
        %784 = vmatprep.subr.mxu0 0.0
        %785 = vmatpush1.msra.mxu0 0.0
        %786 = vmatprep.subr.mxu0 0.0
        %787 = vmatpush1.msra.mxu0 0.0
        %788 = vmatprep.subr.mxu0 0.0
        %789 = vmatpush1.msra.mxu0 0.0
        %790 = vmatprep.subr.mxu0 0.0
        %791 = vmatpush1.msra.mxu0 0.0
        %792 = vmatprep.subr.mxu0 0.0
        %793 = vmatpush1.msra.mxu0 0.0
        %794 = vmatprep.subr.mxu0 0.0
        %795 = vmatpush1.msra.mxu0 0.0
        %796 = vmatprep.subr.mxu0 0.0
        %797 = vmatpush1.msra.mxu0 0.0
        %798 = vmatprep.subr.mxu0 0.0
        %799 = vmatpush1.msra.mxu0 0.0
        %800 = vmatprep.subr.mxu0 0.0
        %801 = vmatpush1.msra.mxu0 0.0
        %802 = vmatprep.subr.mxu0 0.0
        %803 = vmatpush1.msra.mxu0 0.0
        %804 = vmatprep.subr.mxu0 0.0
        %805 = vmatpush1.msra.mxu0 0.0
        %806 = vmatprep.subr.mxu0 0.0
        %807 = vmatpush1.msra.mxu0 0.0
        %808 = vmatprep.mubr.f32.mxu0 0.0
        %809 = vmatmul.mubr.f32.gmra.mrb[0].mxu0 %v696
        %v810 = vpop.f32.mrb[0].mxu0
        %v811 = vadd.f32 0.0, %v810
        %v812 = vpop.f32.mrb[0].mxu0
        %813 = vmatprep.mubr.f32.mxu0 0.0
        %814 = vmatmul.mubr.f32.gmra.mrb[0].mxu0 %v697
        %v815 = vpop.f32.mrb[0].mxu0
        %v816 = vadd.f32 0.0, %v815
        %v817 = vpop.f32.mrb[0].mxu0
        %818 = vmatprep.mubr.f32.mxu0 0.0
        %819 = vmatmul.mubr.f32.gmra.mrb[0].mxu0 %v698
        %v820 = vpop.f32.mrb[0].mxu0
        %v821 = vadd.f32 0.0, %v820
        %v822 = vpop.f32.mrb[0].mxu0
        %823 = vmatprep.mubr.f32.mxu0 0.0
        %824 = vmatmul.mubr.f32.gmra.mrb[0].mxu0 %v699
        %v825 = vpop.f32.mrb[0].mxu0
        %v826 = vadd.f32 0.0, %v825
        %v827 = vpop.f32.mrb[0].mxu0
        %828 = vmatprep.mubr.f32.mxu0 0.0
        %829 = vmatmul.mubr.f32.gmra.mrb[0].mxu0 %v700
        %v830 = vpop.f32.mrb[0].mxu0
        %v831 = vadd.f32 0.0, %v830
        %v832 = vpop.f32.mrb[0].mxu0
        %833 = vmatprep.mubr.f32.mxu0 0.0
        %834 = vmatmul.mubr.f32.gmra.mrb[0].mxu0 %v701
        %v835 = vpop.f32.mrb[0].mxu0
        %v836 = vadd.f32 0.0, %v835
        %v837 = vpop.f32.mrb[0].mxu0
        %838 = vmatprep.mubr.f32.mxu0 0.0
        %839 = vmatmul.mubr.f32.gmra.mrb[0].mxu0 %v702
        %v840 = vpop.f32.mrb[0].mxu0
        %v841 = vadd.f32 0.0, %v840
        %v842 = vpop.f32.mrb[0].mxu0
        %843 = vmatprep.mubr.f32.mxu0 0.0
        %844 = vmatmul.mubr.f32.gmra.mrb[0].mxu0 %v703
        %v845 = vpop.f32.mrb[0].mxu0
        %v846 = vadd.f32 0.0, %v845
        %v847 = vpop.f32.mrb[0].mxu0
        %848 = vmatprep.mubr.f32.mxu0 0.0
        %849 = vmatmul.mubr.f32.gmra.mrb[0].mxu0 %v704
        %v850 = vpop.f32.mrb[0].mxu0
        %v851 = vadd.f32 0.0, %v850
        %v852 = vpop.f32.mrb[0].mxu0
        %853 = vmatprep.mubr.f32.mxu0 0.0
        %854 = vmatmul.mubr.f32.gmra.mrb[0].mxu0 %v705
        %v855 = vpop.f32.mrb[0].mxu0
        %v856 = vadd.f32 0.0, %v855
        %v857 = vpop.f32.mrb[0].mxu0
        %858 = vmatprep.mubr.f32.mxu0 0.0
        %859 = vmatmul.mubr.f32.gmra.mrb[0].mxu0 %v706
        %v860 = vpop.f32.mrb[0].mxu0
        %v861 = vadd.f32 0.0, %v860
        %v862 = vpop.f32.mrb[0].mxu0
        %863 = vmatprep.mubr.f32.mxu0 0.0
        %864 = vmatmul.mubr.f32.gmra.mrb[0].mxu0 %v707
        %v865 = vpop.f32.mrb[0].mxu0
        %v866 = vadd.f32 0.0, %v865
        %v867 = vpop.f32.mrb[0].mxu0
        %868 = vmatprep.mubr.f32.mxu0 0.0
        %869 = vmatmul.mubr.f32.gmra.mrb[0].mxu0 %v708
        %v870 = vpop.f32.mrb[0].mxu0
        %v871 = vadd.f32 0.0, %v870
        %v872 = vpop.f32.mrb[0].mxu0
        %873 = vmatprep.mubr.f32.mxu0 0.0
        %874 = vmatmul.mubr.f32.gmra.mrb[0].mxu0 %v709
        %v875 = vpop.f32.mrb[0].mxu0
        %v876 = vadd.f32 0.0, %v875
        %v877 = vpop.f32.mrb[0].mxu0
        %878 = vmatprep.mubr.f32.mxu0 0.0
        %879 = vmatmul.mubr.f32.gmra.mrb[0].mxu0 %v710
        %v880 = vpop.f32.mrb[0].mxu0
        %v881 = vadd.f32 0.0, %v880
        %v882 = vpop.f32.mrb[0].mxu0
        %883 = vmatprep.mubr.f32.mxu0 0.0
        %884 = vmatmul.mubr.f32.gmra.mrb[0].mxu0 %v711
        %v885 = vpop.f32.mrb[0].mxu0
        %v886 = vadd.f32 0.0, %v885
        %v887 = vpop.f32.mrb[0].mxu0
        %888 = vdwg.mxu0
        %v889 = vadd.f32 %v712, %v811
        %v890 = vadd.f32 %v713, %v816
        %v891 = vadd.f32 %v714, %v821
        %v892 = vadd.f32 %v715, %v826
        %v893 = vadd.f32 %v716, %v831
        %v894 = vadd.f32 %v717, %v836
        %v895 = vadd.f32 %v718, %v841
        %v896 = vadd.f32 %v719, %v846
        %v897 = vadd.f32 %v720, %v851
        %v898 = vadd.f32 %v721, %v856
        %v899 = vadd.f32 %v722, %v861
        %v900 = vadd.f32 %v723, %v866
        %v901 = vadd.f32 %v724, %v871
        %v902 = vadd.f32 %v725, %v876
        %v903 = vadd.f32 %v726, %v881
        %v904 = vadd.f32 %v727, %v886
        %905 = vst.msk [vmem:[#allocation2] sm:$0xff] %vm390, %v889
        %906 = vst.msk [vmem:[#allocation2 + $0x8] sm:$0xff] %vm390, %v890
        %907 = vst.msk [vmem:[#allocation2 + $0x10] sm:$0xff] %vm390, %v891
        %908 = vst.msk [vmem:[#allocation2 + $0x18] sm:$0xff] %vm390, %v892
        %909 = vst.msk [vmem:[#allocation2 + $0x20] sm:$0xff] %vm390, %v893
        %910 = vst.msk [vmem:[#allocation2 + $0x28] sm:$0xff] %vm390, %v894
        %911 = vst.msk [vmem:[#allocation2 + $0x30] sm:$0xff] %vm390, %v895
        %912 = vst.msk [vmem:[#allocation2 + $0x38] sm:$0xff] %vm390, %v896
        %913 = vst.msk [vmem:[#allocation2 + $0x40] sm:$0xff] %vm390, %v897
        %914 = vst.msk [vmem:[#allocation2 + $0x48] sm:$0xff] %vm390, %v898
        %915 = vst.msk [vmem:[#allocation2 + $0x50] sm:$0xff] %vm390, %v899
        %916 = vst.msk [vmem:[#allocation2 + $0x58] sm:$0xff] %vm390, %v900
        %917 = vst.msk [vmem:[#allocation2 + $0x60] sm:$0xff] %vm390, %v901
        %918 = vst.msk [vmem:[#allocation2 + $0x68] sm:$0xff] %vm390, %v902
        %919 = vst.msk [vmem:[#allocation2 + $0x70] sm:$0xff] %vm390, %v903
        %920 = vst.msk [vmem:[#allocation2 + $0x78] sm:$0xff] %vm390, %v904
        %p921 = scmp.eq.s32.totalorder %s21, 1
        // Predicated region
        $region83: #{tpu_custom_call.1} parent=73 // pred_check
          %p922 = pneg %p921
        $region84: #{tpu_custom_call.1} parent=73 // pred_check_branch
          %924 = sbr.rel (%p922) target = $region86
        $region85: #{tpu_custom_call.1} parent=73 // pred_region
          %v925 = vld [vmem:[#allocation2] sm:$0xff]
          %v926 = vld [vmem:[#allocation2 + $0x8] sm:$0xff]
          %v927 = vld [vmem:[#allocation2 + $0x10] sm:$0xff]
          %v928 = vld [vmem:[#allocation2 + $0x18] sm:$0xff]
          %v929 = vld [vmem:[#allocation2 + $0x20] sm:$0xff]
          %v930 = vld [vmem:[#allocation2 + $0x28] sm:$0xff]
          %v931 = vld [vmem:[#allocation2 + $0x30] sm:$0xff]
          %v932 = vld [vmem:[#allocation2 + $0x38] sm:$0xff]
          %v933 = vld [vmem:[#allocation2 + $0x40] sm:$0xff]
          %v934 = vld [vmem:[#allocation2 + $0x48] sm:$0xff]
          %v935 = vld [vmem:[#allocation2 + $0x50] sm:$0xff]
          %v936 = vld [vmem:[#allocation2 + $0x58] sm:$0xff]
          %v937 = vld [vmem:[#allocation2 + $0x60] sm:$0xff]
          %v938 = vld [vmem:[#allocation2 + $0x68] sm:$0xff]
          %v939 = vld [vmem:[#allocation2 + $0x70] sm:$0xff]
          %v940 = vld [vmem:[#allocation2 + $0x78] sm:$0xff]
          %v941 = vld [vmem:[%s4] sm:$0x1]
          %v943 = vlaneseq
          %v944 = vshrl.u32 %v943, 7
          %v945 = vsub.s32 0, %v944
          %v946 = vrot.slane %v941, %v945
          %v948 = vadd.f32 %v925, %v946
          %v949 = vadd.f32 %v926, %v946
          %v950 = vadd.f32 %v927, %v946
          %v951 = vadd.f32 %v928, %v946
          %v952 = vadd.f32 %v929, %v946
          %v953 = vadd.f32 %v930, %v946
          %v954 = vadd.f32 %v931, %v946
          %v955 = vadd.f32 %v932, %v946
          %v956 = vadd.f32 %v933, %v946
          %v957 = vadd.f32 %v934, %v946
          %v958 = vadd.f32 %v935, %v946
          %v959 = vadd.f32 %v936, %v946
          %v960 = vadd.f32 %v937, %v946
          %v961 = vadd.f32 %v938, %v946
          %v962 = vadd.f32 %v939, %v946
          %v963 = vadd.f32 %v940, %v946
          %964 = vst.msk [vmem:[%s340] sm:$0xff] %vm390, %v948
          %965 = vst.msk [vmem:[%s340 + $0x8] sm:$0xff] %vm390, %v949
          %966 = vst.msk [vmem:[%s340 + $0x10] sm:$0xff] %vm390, %v950
          %967 = vst.msk [vmem:[%s340 + $0x18] sm:$0xff] %vm390, %v951
          %968 = vst.msk [vmem:[%s340 + $0x20] sm:$0xff] %vm390, %v952
          %969 = vst.msk [vmem:[%s340 + $0x28] sm:$0xff] %vm390, %v953
          %970 = vst.msk [vmem:[%s340 + $0x30] sm:$0xff] %vm390, %v954
          %971 = vst.msk [vmem:[%s340 + $0x38] sm:$0xff] %vm390, %v955
          %972 = vst.msk [vmem:[%s340 + $0x40] sm:$0xff] %vm390, %v956
          %973 = vst.msk [vmem:[%s340 + $0x48] sm:$0xff] %vm390, %v957
          %974 = vst.msk [vmem:[%s340 + $0x50] sm:$0xff] %vm390, %v958
          %975 = vst.msk [vmem:[%s340 + $0x58] sm:$0xff] %vm390, %v959
          %976 = vst.msk [vmem:[%s340 + $0x60] sm:$0xff] %vm390, %v960
          %977 = vst.msk [vmem:[%s340 + $0x68] sm:$0xff] %vm390, %v961
          %978 = vst.msk [vmem:[%s340 + $0x70] sm:$0xff] %vm390, %v962
          %979 = vst.msk [vmem:[%s340 + $0x78] sm:$0xff] %vm390, %v963
        $region86: #{tpu_custom_call.1} parent=73 // pred_fallthru
          _
        %s980 = smul.u32 16, %s20
        %p981 = scmp.lt.s32.totalorder %s980, 31
        %s982 = scalar_select %p981, %s980, 31
        %s983 = smul.addr %s982, 8
        %s984 = scalar_lea.vmem %s5, %s983
        // Predicated region
        $region87: #{tpu_custom_call.1} parent=73 // pred_check
          %p985 = pneg %p171
        $region88: #{tpu_custom_call.1} parent=73 // pred_check_branch
          %987 = sbr.rel (%p985) target = $region90
        $region89: #{tpu_custom_call.1} parent=73 // pred_region
          %s988 = smul.u32 16, %s20
        $region90: #{tpu_custom_call.1} parent=73 // pred_fallthru
          _
      $region74: #{tpu_custom_call.1} parent=5 // pred_fallthru
        _
      %p989 = scmp.le.s32.totalorder 2, %s11
      // Predicated region
      $region91: #{tpu_custom_call.1} parent=5 // pred_check
        %p990 = pneg %p989
      $region92: #{tpu_custom_call.1} parent=5 // pred_check_branch
        %992 = sbr.rel (%p990) target = $region94
      $region93: #{tpu_custom_call.1} parent=5 // pred_region
        %s993 = ssub.s32 %s11, 2
        // Predicated region
        $region95: #{tpu_custom_call.1} parent=93 // pred_check
          %p994 = pneg %p177
        $region96: #{tpu_custom_call.1} parent=93 // pred_check_branch
          %996 = sbr.rel (%p994) target = $region98
        $region97: #{tpu_custom_call.1} parent=93 // pred_region
          %s997 = smul.u32 16, %s22
          %p998 = scmp.lt.s32.totalorder %s997, 31
          %s999 = scalar_select %p998, %s997, 31
          %s1000 = smul.addr %s999, 8
          %s1001 = scalar_lea.vmem %s5, %s1000
        $region98: #{tpu_custom_call.1} parent=93 // pred_fallthru
          _
      $region94: #{tpu_custom_call.1} parent=5 // pred_fallthru
        _
    $region6: #{tpu_custom_call.1} parent=1 // loop_footer
      %s15 = sadd.s32 1, %s11
    $region7: #{tpu_custom_call.1} parent=1 // loop_footer_branch
      %10 = sbr.rel target = $region3
    $region8: #{tpu_custom_call.1} parent=1 // loop_exit
      _

</llo_original>
